<compile_context>
chip_gen: v5e
topology: v5e:2x2
jax: 0.10.0
libtpu: 0.0.40
codegen_flags: <defaults>
</compile_context>

<pallas_src>
import jax
import jax.numpy as jnp
from jax.experimental import pallas as pl
from jax.experimental.pallas import tpu as pltpu

# ---- problem sizes (small, consistent with the module) ----
N = 1          # batch (module uses 1)
CIN = 16       # conv in channels  (from __init__)
COUT = 15      # conv out channels (from __init__)
H = W = 16     # small spatial instead of 256
PAD = 2        # conv padding
HP = H + 2 * PAD
WP = W + 2 * PAD
HPWP = HP * WP  # 400 -> lane axis


def conv1x1_fused_kernel(w_ref, x_ref, b_ref, oc_ref, od_ref, out_ref):
    # w_ref : (COUT, CIN)   1x1 conv weight
    # x_ref : (CIN, HPWP)   zero-padded image, channels-on-sublanes / spatial-on-lanes
    # b_ref : (COUT, 1)     conv bias          (broadcasts over lanes)
    # oc_ref: (COUT, HPWP)  other_conv flattened (aliased with out_ref's HBM buffer)
    # od_ref: (1, HPWP)     other_dense row    (broadcasts over sublanes)
    # out_ref:(COUT, HPWP)
    acc = jnp.dot(w_ref[...], x_ref[...], preferred_element_type=jnp.float32)
    out_ref[...] = acc + b_ref[...] + oc_ref[...] + od_ref[...]


@jax.jit
def model_forward(x, weight, bias, other_conv, other_dense):
    """x: (1, CIN, H, W) NCHW.  Returns (1, COUT, HP, WP) NCHW (like PyTorch)."""
    # zero-pad spatially (conv padding=2); keep NCHW so no transposes are needed.
    # These producers are fused into the pallas_call operands via allow_input_fusion.
    x_pad = jnp.pad(x, ((0, 0), (0, 0), (PAD, PAD), (PAD, PAD)))   # (1,CIN,HP,WP)
    x_mat = x_pad[0].reshape(CIN, HPWP)                            # (CIN,HPWP)

    w_mat = weight[:, :, 0, 0]                                     # (COUT,CIN)
    b_mat = bias.reshape(COUT, 1)                                  # (COUT,1)

    oc_mat = other_conv[0].reshape(COUT, HPWP)                     # (COUT,HPWP)
    # other_dense (1, WP) broadcasts over (c, h): value depends only on w
    od_row = jnp.tile(other_dense[0], HP).reshape(1, HPWP)         # (1,HPWP)

    vmem_spec = pl.BlockSpec(memory_space=pltpu.MemorySpace.VMEM)
    out_mat = pl.pallas_call(
        conv1x1_fused_kernel,
        out_shape=jax.ShapeDtypeStruct((COUT, HPWP), jnp.float32),
        in_specs=[vmem_spec] * 5,
        out_specs=vmem_spec,
        # reuse other_conv's buffer for the output (input 3 -> output 0)
        input_output_aliases={3: 0},
        compiler_params=pltpu.CompilerParams(
            # let XLA fuse pad/reshape/tile producers into the custom-call
            # operands (all except the aliased other_conv operand).
            allow_input_fusion=[True, True, True, False, True],
        ),
    )(w_mat, x_mat, b_mat, oc_mat, od_row)

    # back to NCHW with a plain reshape (no transpose)
    return out_mat.reshape(COUT, HP, WP)[None]                     # (1,COUT,HP,WP)


if __name__ == "__main__":
    key = jax.random.PRNGKey(0)
    k_x, k_w, k_b, k_oc, k_od = jax.random.split(key, 5)

    # deterministic parameter init (Conv2d(16,15,1) -> weight (15,16,1,1), bias (15,))
    fan_in = CIN
    bound = 1.0 / (fan_in ** 0.5)
    weight = jax.random.uniform(k_w, (COUT, CIN, 1, 1), jnp.float32, -bound, bound)
    bias = jax.random.uniform(k_b, (COUT,), jnp.float32, -bound, bound)

    # inputs (broadcast-compatible variants of the module's forward args)
    x = jax.random.normal(k_x, (N, CIN, H, W), jnp.float32)
    other_conv = jax.random.normal(k_oc, (N, COUT, HP, WP), jnp.float32)
    other_dense = jax.random.normal(k_od, (1, WP), jnp.float32)

    out = jax.block_until_ready(model_forward(x, weight, bias, other_conv, other_dense))

    # pure-JAX reference: 1x1 conv (padding=2) + bias + adds
    x_pad = jnp.pad(x, ((0, 0), (0, 0), (PAD, PAD), (PAD, PAD)))
    v1 = jnp.einsum('oc,nchw->nohw', weight[:, :, 0, 0], x_pad) + bias[None, :, None, None]
    ref = v1 + other_conv + other_dense  # (1,WP) broadcasts over last dim

    assert out.shape == (N, COUT, HP, WP), out.shape
    assert jnp.allclose(out, ref, atol=1e-4, rtol=1e-4), float(jnp.max(jnp.abs(out - ref)))
    print("KERNEL_OK")
</pallas_src>

<mosaic_0001>
module attributes {stable_mosaic.version = 11 : i64} {
  func.func @conv1x1_fused_kernel(%arg0: memref<15x16xf32, #tpu.memory_space<vmem>>, %arg1: memref<16x400xf32, #tpu.memory_space<vmem>>, %arg2: memref<15x1xf32, #tpu.memory_space<vmem>>, %arg3: memref<15x400xf32, #tpu.memory_space<vmem>>, %arg4: memref<1x400xf32, #tpu.memory_space<vmem>>, %arg5: memref<15x400xf32, #tpu.memory_space<vmem>>) attributes {dimension_semantics = [], scalar_prefetch = 0 : i64, scratch_operands = 0 : i64, tpu.core_type = #tpu.core_type<tc>} {
    %c0 = arith.constant 0 : index
    %c0_0 = arith.constant 0 : index
    %0 = vector.load %arg0[%c0, %c0_0] : memref<15x16xf32, #tpu.memory_space<vmem>>, vector<15x16xf32>
    %c0_1 = arith.constant 0 : index
    %c0_2 = arith.constant 0 : index
    %1 = vector.load %arg1[%c0_1, %c0_2] : memref<16x400xf32, #tpu.memory_space<vmem>>, vector<16x400xf32>
    %cst = arith.constant dense<0.000000e+00> : vector<15x400xf32>
    %2 = tpu.matmul %0, %1, %cst {dimension_numbers = #tpu.dot_dimension_numbers<[1], [0], [0], [1], [0, 0, 1, 1], [], []>} : vector<15x16xf32>, vector<16x400xf32>, vector<15x400xf32> -> vector<15x400xf32>
    %c0_3 = arith.constant 0 : index
    %c0_4 = arith.constant 0 : index
    %3 = vector.load %arg2[%c0_3, %c0_4] : memref<15x1xf32, #tpu.memory_space<vmem>>, vector<15x1xf32>
    %4 = vector.broadcast %3 : vector<15x1xf32> to vector<15x400xf32>
    %5 = arith.addf %2, %4 : vector<15x400xf32>
    %c0_5 = arith.constant 0 : index
    %c0_6 = arith.constant 0 : index
    %6 = vector.load %arg3[%c0_5, %c0_6] : memref<15x400xf32, #tpu.memory_space<vmem>>, vector<15x400xf32>
    %7 = arith.addf %5, %6 : vector<15x400xf32>
    %c0_7 = arith.constant 0 : index
    %c0_8 = arith.constant 0 : index
    %8 = vector.load %arg4[%c0_7, %c0_8] : memref<1x400xf32, #tpu.memory_space<vmem>>, vector<1x400xf32>
    %9 = vector.broadcast %8 : vector<1x400xf32> to vector<15x400xf32>
    %10 = arith.addf %7, %9 : vector<15x400xf32>
    %c0_9 = arith.constant 0 : index
    %c0_10 = arith.constant 0 : index
    %11 = vector.load %arg5[%c0_9, %c0_10] : memref<15x400xf32, #tpu.memory_space<vmem>>, vector<15x400xf32>
    tpu.vector_store %arg5[%c0_9, %c0_10], %10 {strides = array<i32>} : memref<15x400xf32, #tpu.memory_space<vmem>>, vector<15x400xf32>,
    return
  }
}

</mosaic_0001>

<llo_original>
// kernel: squeeze.3
$region0: #{squeeze.3}
  %s0 = inlined_call_operand.vmem [shape: f32[1,16,20,20], index: 0, kind: input, shape index: {}]
  %s1 = inlined_call_operand.vmem [shape: f32[16,400], index: 1, kind: output, shape index: {}]
  %v2 = vld [vmem:[%s0] ss:$24 sm:$0xf]
  %v3 = vld [vmem:[%s0] ss:$24 sm:$0xf0]
  %vm4 = vcmask 1047556
  %v5 = vsel %vm4, %v3, %v2
  %vm6 = vcmask 162816
  %7 = vst.msk [vmem:[%s1] sm:$0xff] %vm6, %v5
  %s8 = scalar_lea.vmem %s0, 192
  %v9 = vld [vmem:[%s8] ss:$24 sm:$0xf]
  %s10 = scalar_lea.vmem %s0, 192
  %v11 = vld [vmem:[%s10] ss:$24 sm:$0xf0]
  %vm12 = vcmask 1047556
  %v13 = vsel %vm12, %v11, %v9
  %vm14 = vcmask 162816
  %s15 = scalar_lea.vmem %s1, 32
  %16 = vst.msk [vmem:[%s15] sm:$0xff] %vm14, %v13
  %s17 = scalar_lea.vmem %s0, 19
  %v18 = vld [vmem:[%s17] ss:$24 sm:$0xf]
  %s19 = scalar_lea.vmem %s0, 19
  %v20 = vld [vmem:[%s19] ss:$24 sm:$0xf0]
  %vm21 = vcmask 1047556
  %v22 = vsel %vm21, %v20, %v18
  %s23 = scalar_lea.vmem %s0, 19
  %v24 = vld [vmem:[%s23] ss:$24 sm:$0xf]
  %s25 = scalar_lea.vmem %s0, 19
  %v26 = vld [vmem:[%s25] ss:$24 sm:$0xf0]
  %vm27 = vcmask 1047556
  %v28 = vsel %vm27, %v26, %v24
  %vm29 = vcmask 31744
  %v30 = vsel %vm29, %v28, %v22
  %31 = vrot.lane.b32.xlu0 %v30, 124
  %v32 = vpop.permute.xlu0 %31
  %vm33 = vcmask 130048
  %s34 = scalar_lea.vmem %s1, 24
  %35 = vst.msk [vmem:[%s34] sm:$0xff] %vm33, %v32
  %vm36 = vcmask 1048544
  %s37 = scalar_lea.vmem %s1, 16
  %38 = vst.msk [vmem:[%s37] sm:$0xff] %vm36, %v32
  %s39 = scalar_lea.vmem %s0, 211
  %v40 = vld [vmem:[%s39] ss:$24 sm:$0xf]
  %s41 = scalar_lea.vmem %s0, 211
  %v42 = vld [vmem:[%s41] ss:$24 sm:$0xf0]
  %vm43 = vcmask 1047556
  %v44 = vsel %vm43, %v42, %v40
  %s45 = scalar_lea.vmem %s0, 211
  %v46 = vld [vmem:[%s45] ss:$24 sm:$0xf]
  %s47 = scalar_lea.vmem %s0, 211
  %v48 = vld [vmem:[%s47] ss:$24 sm:$0xf0]
  %vm49 = vcmask 1047556
  %v50 = vsel %vm49, %v48, %v46
  %vm51 = vcmask 31744
  %v52 = vsel %vm51, %v50, %v44
  %53 = vrot.lane.b32.xlu0 %v52, 124
  %v54 = vpop.permute.xlu0 %53
  %vm55 = vcmask 130048
  %s56 = scalar_lea.vmem %s1, 56
  %57 = vst.msk [vmem:[%s56] sm:$0xff] %vm55, %v54
  %vm58 = vcmask 1048544
  %s59 = scalar_lea.vmem %s1, 48
  %60 = vst.msk [vmem:[%s59] sm:$0xff] %vm58, %v54
  %s61 = scalar_lea.vmem %s0, 6
  %v62 = vld [vmem:[%s61] ss:$24 sm:$0xf]
  %s63 = scalar_lea.vmem %s0, 6
  %v64 = vld [vmem:[%s63] ss:$24 sm:$0xf0]
  %vm65 = vcmask 1047556
  %v66 = vsel %vm65, %v64, %v62
  %s67 = scalar_lea.vmem %s0, 6
  %v68 = vld [vmem:[%s67] ss:$24 sm:$0xf]
  %s69 = scalar_lea.vmem %s0, 6
  %v70 = vld [vmem:[%s69] ss:$24 sm:$0xf0]
  %vm71 = vcmask 1047556
  %v72 = vsel %vm71, %v70, %v68
  %vm73 = vcmask 64512
  %v74 = vsel %vm73, %v72, %v66
  %75 = vrot.lane.b32.xlu0 %v74, 120
  %v76 = vpop.permute.xlu0 %75
  %vm77 = vcmask 97280
  %s78 = scalar_lea.vmem %s1, 8
  %79 = vst.msk [vmem:[%s78] sm:$0xff] %vm77, %v76
  %vm80 = vcmask 1048512
  %81 = vst.msk [vmem:[%s1] sm:$0xff] %vm80, %v76
  %s82 = scalar_lea.vmem %s0, 198
  %v83 = vld [vmem:[%s82] ss:$24 sm:$0xf]
  %s84 = scalar_lea.vmem %s0, 198
  %v85 = vld [vmem:[%s84] ss:$24 sm:$0xf0]
  %vm86 = vcmask 1047556
  %v87 = vsel %vm86, %v85, %v83
  %s88 = scalar_lea.vmem %s0, 198
  %v89 = vld [vmem:[%s88] ss:$24 sm:$0xf]
  %s90 = scalar_lea.vmem %s0, 198
  %v91 = vld [vmem:[%s90] ss:$24 sm:$0xf0]
  %vm92 = vcmask 1047556
  %v93 = vsel %vm92, %v91, %v89
  %vm94 = vcmask 64512
  %v95 = vsel %vm94, %v93, %v87
  %96 = vrot.lane.b32.xlu0 %v95, 120
  %v97 = vpop.permute.xlu0 %96
  %vm98 = vcmask 97280
  %s99 = scalar_lea.vmem %s1, 40
  %100 = vst.msk [vmem:[%s99] sm:$0xff] %vm98, %v97
  %vm101 = vcmask 1048512
  %s102 = scalar_lea.vmem %s1, 32
  %103 = vst.msk [vmem:[%s102] sm:$0xff] %vm101, %v97
  %s104 = scalar_lea.vmem %s0, 12
  %v105 = vld [vmem:[%s104] ss:$24 sm:$0xf]
  %s106 = scalar_lea.vmem %s0, 12
  %v107 = vld [vmem:[%s106] ss:$24 sm:$0xf0]
  %vm108 = vcmask 1047556
  %v109 = vsel %vm108, %v107, %v105
  %s110 = scalar_lea.vmem %s0, 12
  %v111 = vld [vmem:[%s110] ss:$24 sm:$0xf]
  %s112 = scalar_lea.vmem %s0, 12
  %v113 = vld [vmem:[%s112] ss:$24 sm:$0xf0]
  %vm114 = vcmask 1047556
  %v115 = vsel %vm114, %v113, %v111
  %vm116 = vcmask 130048
  %v117 = vsel %vm116, %v115, %v109
  %118 = vrot.lane.b32.xlu0 %v117, 112
  %v119 = vpop.permute.xlu0 %118
  %vm120 = vcmask 31744
  %s121 = scalar_lea.vmem %s1, 16
  %122 = vst.msk [vmem:[%s121] sm:$0xff] %vm120, %v119
  %vm123 = vcmask 1048448
  %s124 = scalar_lea.vmem %s1, 8
  %125 = vst.msk [vmem:[%s124] sm:$0xff] %vm123, %v119
  %s126 = scalar_lea.vmem %s0, 204
  %v127 = vld [vmem:[%s126] ss:$24 sm:$0xf]
  %s128 = scalar_lea.vmem %s0, 204
  %v129 = vld [vmem:[%s128] ss:$24 sm:$0xf0]
  %vm130 = vcmask 1047556
  %v131 = vsel %vm130, %v129, %v127
  %s132 = scalar_lea.vmem %s0, 204
  %v133 = vld [vmem:[%s132] ss:$24 sm:$0xf]
  %s134 = scalar_lea.vmem %s0, 204
  %v135 = vld [vmem:[%s134] ss:$24 sm:$0xf0]
  %vm136 = vcmask 1047556
  %v137 = vsel %vm136, %v135, %v133
  %vm138 = vcmask 130048
  %v139 = vsel %vm138, %v137, %v131
  %140 = vrot.lane.b32.xlu0 %v139, 112
  %v141 = vpop.permute.xlu0 %140
  %vm142 = vcmask 31744
  %s143 = scalar_lea.vmem %s1, 48
  %144 = vst.msk [vmem:[%s143] sm:$0xff] %vm142, %v141
  %vm145 = vcmask 1048448
  %s146 = scalar_lea.vmem %s1, 40
  %147 = vst.msk [vmem:[%s146] sm:$0xff] %vm145, %v141
  %s148 = scalar_lea.vmem %s0, 18
  %v149 = vld [vmem:[%s148] ss:$24 sm:$0xf]
  %s150 = scalar_lea.vmem %s0, 18
  %v151 = vld [vmem:[%s150] ss:$24 sm:$0xf0]
  %vm152 = vcmask 1047556
  %v153 = vsel %vm152, %v151, %v149
  %154 = vrot.lane.b32.xlu0 %v153, 104
  %v155 = vpop.permute.xlu0 %154
  %vm156 = vcmask 1015616
  %s157 = scalar_lea.vmem %s1, 16
  %158 = vst.msk [vmem:[%s157] sm:$0xff] %vm156, %v155
  %s159 = scalar_lea.vmem %s0, 210
  %v160 = vld [vmem:[%s159] ss:$24 sm:$0xf]
  %s161 = scalar_lea.vmem %s0, 210
  %v162 = vld [vmem:[%s161] ss:$24 sm:$0xf0]
  %vm163 = vcmask 1047556
  %v164 = vsel %vm163, %v162, %v160
  %165 = vrot.lane.b32.xlu0 %v164, 104
  %v166 = vpop.permute.xlu0 %165
  %vm167 = vcmask 1015616
  %s168 = scalar_lea.vmem %s1, 48
  %169 = vst.msk [vmem:[%s168] sm:$0xff] %vm167, %v166
  %s170 = scalar_lea.vmem %s0, 5
  %v171 = vld [vmem:[%s170] ss:$24 sm:$0xf]
  %s172 = scalar_lea.vmem %s0, 5
  %v173 = vld [vmem:[%s172] ss:$24 sm:$0xf0]
  %vm174 = vcmask 1047556
  %v175 = vsel %vm174, %v173, %v171
  %176 = vrot.lane.b32.xlu0 %v175, 100
  %v177 = vpop.permute.xlu0 %176
  %vm178 = vcmask 982816
  %179 = vst.msk [vmem:[%s1] sm:$0xff] %vm178, %v177
  %s180 = scalar_lea.vmem %s0, 197
  %v181 = vld [vmem:[%s180] ss:$24 sm:$0xf]
  %s182 = scalar_lea.vmem %s0, 197
  %v183 = vld [vmem:[%s182] ss:$24 sm:$0xf0]
  %vm184 = vcmask 1047556
  %v185 = vsel %vm184, %v183, %v181
  %186 = vrot.lane.b32.xlu0 %v185, 100
  %v187 = vpop.permute.xlu0 %186
  %vm188 = vcmask 982816
  %s189 = scalar_lea.vmem %s1, 32
  %190 = vst.msk [vmem:[%s189] sm:$0xff] %vm188, %v187
  %s191 = scalar_lea.vmem %s0, 11
  %v192 = vld [vmem:[%s191] ss:$24 sm:$0xf]
  %s193 = scalar_lea.vmem %s0, 11
  %v194 = vld [vmem:[%s193] ss:$24 sm:$0xf0]
  %vm195 = vcmask 1047556
  %v196 = vsel %vm195, %v194, %v192
  %197 = vrot.lane.b32.xlu0 %v196, 92
  %v198 = vpop.permute.xlu0 %197
  %vm199 = vcmask 917216
  %s200 = scalar_lea.vmem %s1, 8
  %201 = vst.msk [vmem:[%s200] sm:$0xff] %vm199, %v198
  %s202 = scalar_lea.vmem %s0, 203
  %v203 = vld [vmem:[%s202] ss:$24 sm:$0xf]
  %s204 = scalar_lea.vmem %s0, 203
  %v205 = vld [vmem:[%s204] ss:$24 sm:$0xf0]
  %vm206 = vcmask 1047556
  %v207 = vsel %vm206, %v205, %v203
  %208 = vrot.lane.b32.xlu0 %v207, 92
  %v209 = vpop.permute.xlu0 %208
  %vm210 = vcmask 917216
  %s211 = scalar_lea.vmem %s1, 40
  %212 = vst.msk [vmem:[%s211] sm:$0xff] %vm210, %v209
  %s213 = scalar_lea.vmem %s0, 17
  %v214 = vld [vmem:[%s213] ss:$24 sm:$0xf]
  %s215 = scalar_lea.vmem %s0, 17
  %v216 = vld [vmem:[%s215] ss:$24 sm:$0xf0]
  %vm217 = vcmask 1047556
  %v218 = vsel %vm217, %v216, %v214
  %219 = vrot.lane.b32.xlu0 %v218, 84
  %v220 = vpop.permute.xlu0 %219
  %vm221 = vcmask 851616
  %s222 = scalar_lea.vmem %s1, 16
  %223 = vst.msk [vmem:[%s222] sm:$0xff] %vm221, %v220
  %s224 = scalar_lea.vmem %s0, 209
  %v225 = vld [vmem:[%s224] ss:$24 sm:$0xf]
  %s226 = scalar_lea.vmem %s0, 209
  %v227 = vld [vmem:[%s226] ss:$24 sm:$0xf0]
  %vm228 = vcmask 1047556
  %v229 = vsel %vm228, %v227, %v225
  %230 = vrot.lane.b32.xlu0 %v229, 84
  %v231 = vpop.permute.xlu0 %230
  %vm232 = vcmask 851616
  %s233 = scalar_lea.vmem %s1, 48
  %234 = vst.msk [vmem:[%s233] sm:$0xff] %vm232, %v231
  %s235 = scalar_lea.vmem %s0, 4
  %v236 = vld [vmem:[%s235] ss:$24 sm:$0xf]
  %s237 = scalar_lea.vmem %s0, 4
  %v238 = vld [vmem:[%s237] ss:$24 sm:$0xf0]
  %vm239 = vcmask 1047556
  %v240 = vsel %vm239, %v238, %v236
  %241 = vrot.lane.b32.xlu0 %v240, 80
  %v242 = vpop.permute.xlu0 %241
  %vm243 = vcmask 818816
  %244 = vst.msk [vmem:[%s1] sm:$0xff] %vm243, %v242
  %s245 = scalar_lea.vmem %s0, 196
  %v246 = vld [vmem:[%s245] ss:$24 sm:$0xf]
  %s247 = scalar_lea.vmem %s0, 196
  %v248 = vld [vmem:[%s247] ss:$24 sm:$0xf0]
  %vm249 = vcmask 1047556
  %v250 = vsel %vm249, %v248, %v246
  %251 = vrot.lane.b32.xlu0 %v250, 80
  %v252 = vpop.permute.xlu0 %251
  %vm253 = vcmask 818816
  %s254 = scalar_lea.vmem %s1, 32
  %255 = vst.msk [vmem:[%s254] sm:$0xff] %vm253, %v252
  %s256 = scalar_lea.vmem %s0, 10
  %v257 = vld [vmem:[%s256] ss:$24 sm:$0xf]
  %s258 = scalar_lea.vmem %s0, 10
  %v259 = vld [vmem:[%s258] ss:$24 sm:$0xf0]
  %vm260 = vcmask 1047556
  %v261 = vsel %vm260, %v259, %v257
  %262 = vrot.lane.b32.xlu0 %v261, 72
  %v263 = vpop.permute.xlu0 %262
  %vm264 = vcmask 753216
  %s265 = scalar_lea.vmem %s1, 8
  %266 = vst.msk [vmem:[%s265] sm:$0xff] %vm264, %v263
  %s267 = scalar_lea.vmem %s0, 202
  %v268 = vld [vmem:[%s267] ss:$24 sm:$0xf]
  %s269 = scalar_lea.vmem %s0, 202
  %v270 = vld [vmem:[%s269] ss:$24 sm:$0xf0]
  %vm271 = vcmask 1047556
  %v272 = vsel %vm271, %v270, %v268
  %273 = vrot.lane.b32.xlu0 %v272, 72
  %v274 = vpop.permute.xlu0 %273
  %vm275 = vcmask 753216
  %s276 = scalar_lea.vmem %s1, 40
  %277 = vst.msk [vmem:[%s276] sm:$0xff] %vm275, %v274
  %s278 = scalar_lea.vmem %s0, 16
  %v279 = vld [vmem:[%s278] ss:$24 sm:$0xf]
  %s280 = scalar_lea.vmem %s0, 16
  %v281 = vld [vmem:[%s280] ss:$24 sm:$0xf0]
  %vm282 = vcmask 1047556
  %v283 = vsel %vm282, %v281, %v279
  %284 = vrot.lane.b32.xlu0 %v283, 64
  %v285 = vpop.permute.xlu0 %284
  %vm286 = vcmask 687616
  %s287 = scalar_lea.vmem %s1, 16
  %288 = vst.msk [vmem:[%s287] sm:$0xff] %vm286, %v285
  %s289 = scalar_lea.vmem %s0, 208
  %v290 = vld [vmem:[%s289] ss:$24 sm:$0xf]
  %s291 = scalar_lea.vmem %s0, 208
  %v292 = vld [vmem:[%s291] ss:$24 sm:$0xf0]
  %vm293 = vcmask 1047556
  %v294 = vsel %vm293, %v292, %v290
  %295 = vrot.lane.b32.xlu0 %v294, 64
  %v296 = vpop.permute.xlu0 %295
  %vm297 = vcmask 687616
  %s298 = scalar_lea.vmem %s1, 48
  %299 = vst.msk [vmem:[%s298] sm:$0xff] %vm297, %v296
  %s300 = scalar_lea.vmem %s0, 3
  %v301 = vld [vmem:[%s300] ss:$24 sm:$0xf]
  %s302 = scalar_lea.vmem %s0, 3
  %v303 = vld [vmem:[%s302] ss:$24 sm:$0xf0]
  %vm304 = vcmask 1047556
  %v305 = vsel %vm304, %v303, %v301
  %306 = vrot.lane.b32.xlu0 %v305, 60
  %v307 = vpop.permute.xlu0 %306
  %vm308 = vcmask 654816
  %309 = vst.msk [vmem:[%s1] sm:$0xff] %vm308, %v307
  %s310 = scalar_lea.vmem %s0, 195
  %v311 = vld [vmem:[%s310] ss:$24 sm:$0xf]
  %s312 = scalar_lea.vmem %s0, 195
  %v313 = vld [vmem:[%s312] ss:$24 sm:$0xf0]
  %vm314 = vcmask 1047556
  %v315 = vsel %vm314, %v313, %v311
  %316 = vrot.lane.b32.xlu0 %v315, 60
  %v317 = vpop.permute.xlu0 %316
  %vm318 = vcmask 654816
  %s319 = scalar_lea.vmem %s1, 32
  %320 = vst.msk [vmem:[%s319] sm:$0xff] %vm318, %v317
  %s321 = scalar_lea.vmem %s0, 9
  %v322 = vld [vmem:[%s321] ss:$24 sm:$0xf]
  %s323 = scalar_lea.vmem %s0, 9
  %v324 = vld [vmem:[%s323] ss:$24 sm:$0xf0]
  %vm325 = vcmask 1047556
  %v326 = vsel %vm325, %v324, %v322
  %327 = vrot.lane.b32.xlu0 %v326, 52
  %v328 = vpop.permute.xlu0 %327
  %vm329 = vcmask 589216
  %s330 = scalar_lea.vmem %s1, 8
  %331 = vst.msk [vmem:[%s330] sm:$0xff] %vm329, %v328
  %s332 = scalar_lea.vmem %s0, 201
  %v333 = vld [vmem:[%s332] ss:$24 sm:$0xf]
  %s334 = scalar_lea.vmem %s0, 201
  %v335 = vld [vmem:[%s334] ss:$24 sm:$0xf0]
  %vm336 = vcmask 1047556
  %v337 = vsel %vm336, %v335, %v333
  %338 = vrot.lane.b32.xlu0 %v337, 52
  %v339 = vpop.permute.xlu0 %338
  %vm340 = vcmask 589216
  %s341 = scalar_lea.vmem %s1, 40
  %342 = vst.msk [vmem:[%s341] sm:$0xff] %vm340, %v339
  %s343 = scalar_lea.vmem %s0, 15
  %v344 = vld [vmem:[%s343] ss:$24 sm:$0xf]
  %s345 = scalar_lea.vmem %s0, 15
  %v346 = vld [vmem:[%s345] ss:$24 sm:$0xf0]
  %vm347 = vcmask 1047556
  %v348 = vsel %vm347, %v346, %v344
  %349 = vrot.lane.b32.xlu0 %v348, 44
  %v350 = vpop.permute.xlu0 %349
  %vm351 = vcmask 523616
  %s352 = scalar_lea.vmem %s1, 16
  %353 = vst.msk [vmem:[%s352] sm:$0xff] %vm351, %v350
  %s354 = scalar_lea.vmem %s0, 207
  %v355 = vld [vmem:[%s354] ss:$24 sm:$0xf]
  %s356 = scalar_lea.vmem %s0, 207
  %v357 = vld [vmem:[%s356] ss:$24 sm:$0xf0]
  %vm358 = vcmask 1047556
  %v359 = vsel %vm358, %v357, %v355
  %360 = vrot.lane.b32.xlu0 %v359, 44
  %v361 = vpop.permute.xlu0 %360
  %vm362 = vcmask 523616
  %s363 = scalar_lea.vmem %s1, 48
  %364 = vst.msk [vmem:[%s363] sm:$0xff] %vm362, %v361
  %s365 = scalar_lea.vmem %s0, 2
  %v366 = vld [vmem:[%s365] ss:$24 sm:$0xf]
  %s367 = scalar_lea.vmem %s0, 2
  %v368 = vld [vmem:[%s367] ss:$24 sm:$0xf0]
  %vm369 = vcmask 1047556
  %v370 = vsel %vm369, %v368, %v366
  %371 = vrot.lane.b32.xlu0 %v370, 40
  %v372 = vpop.permute.xlu0 %371
  %vm373 = vcmask 490816
  %374 = vst.msk [vmem:[%s1] sm:$0xff] %vm373, %v372
  %s375 = scalar_lea.vmem %s0, 194
  %v376 = vld [vmem:[%s375] ss:$24 sm:$0xf]
  %s377 = scalar_lea.vmem %s0, 194
  %v378 = vld [vmem:[%s377] ss:$24 sm:$0xf0]
  %vm379 = vcmask 1047556
  %v380 = vsel %vm379, %v378, %v376
  %381 = vrot.lane.b32.xlu0 %v380, 40
  %v382 = vpop.permute.xlu0 %381
  %vm383 = vcmask 490816
  %s384 = scalar_lea.vmem %s1, 32
  %385 = vst.msk [vmem:[%s384] sm:$0xff] %vm383, %v382
  %s386 = scalar_lea.vmem %s0, 8
  %v387 = vld [vmem:[%s386] ss:$24 sm:$0xf]
  %s388 = scalar_lea.vmem %s0, 8
  %v389 = vld [vmem:[%s388] ss:$24 sm:$0xf0]
  %vm390 = vcmask 1047556
  %v391 = vsel %vm390, %v389, %v387
  %392 = vrot.lane.b32.xlu0 %v391, 32
  %v393 = vpop.permute.xlu0 %392
  %vm394 = vcmask 425216
  %s395 = scalar_lea.vmem %s1, 8
  %396 = vst.msk [vmem:[%s395] sm:$0xff] %vm394, %v393
  %s397 = scalar_lea.vmem %s0, 200
  %v398 = vld [vmem:[%s397] ss:$24 sm:$0xf]
  %s399 = scalar_lea.vmem %s0, 200
  %v400 = vld [vmem:[%s399] ss:$24 sm:$0xf0]
  %vm401 = vcmask 1047556
  %v402 = vsel %vm401, %v400, %v398
  %403 = vrot.lane.b32.xlu0 %v402, 32
  %v404 = vpop.permute.xlu0 %403
  %vm405 = vcmask 425216
  %s406 = scalar_lea.vmem %s1, 40
  %407 = vst.msk [vmem:[%s406] sm:$0xff] %vm405, %v404
  %s408 = scalar_lea.vmem %s0, 14
  %v409 = vld [vmem:[%s408] ss:$24 sm:$0xf]
  %s410 = scalar_lea.vmem %s0, 14
  %v411 = vld [vmem:[%s410] ss:$24 sm:$0xf0]
  %vm412 = vcmask 1047556
  %v413 = vsel %vm412, %v411, %v409
  %414 = vrot.lane.b32.xlu0 %v413, 24
  %v415 = vpop.permute.xlu0 %414
  %vm416 = vcmask 359616
  %s417 = scalar_lea.vmem %s1, 16
  %418 = vst.msk [vmem:[%s417] sm:$0xff] %vm416, %v415
  %s419 = scalar_lea.vmem %s0, 206
  %v420 = vld [vmem:[%s419] ss:$24 sm:$0xf]
  %s421 = scalar_lea.vmem %s0, 206
  %v422 = vld [vmem:[%s421] ss:$24 sm:$0xf0]
  %vm423 = vcmask 1047556
  %v424 = vsel %vm423, %v422, %v420
  %425 = vrot.lane.b32.xlu0 %v424, 24
  %v426 = vpop.permute.xlu0 %425
  %vm427 = vcmask 359616
  %s428 = scalar_lea.vmem %s1, 48
  %429 = vst.msk [vmem:[%s428] sm:$0xff] %vm427, %v426
  %s430 = scalar_lea.vmem %s0, 1
  %v431 = vld [vmem:[%s430] ss:$24 sm:$0xf]
  %s432 = scalar_lea.vmem %s0, 1
  %v433 = vld [vmem:[%s432] ss:$24 sm:$0xf0]
  %vm434 = vcmask 1047556
  %v435 = vsel %vm434, %v433, %v431
  %436 = vrot.lane.b32.xlu0 %v435, 20
  %v437 = vpop.permute.xlu0 %436
  %vm438 = vcmask 326816
  %439 = vst.msk [vmem:[%s1] sm:$0xff] %vm438, %v437
  %s440 = scalar_lea.vmem %s0, 193
  %v441 = vld [vmem:[%s440] ss:$24 sm:$0xf]
  %s442 = scalar_lea.vmem %s0, 193
  %v443 = vld [vmem:[%s442] ss:$24 sm:$0xf0]
  %vm444 = vcmask 1047556
  %v445 = vsel %vm444, %v443, %v441
  %446 = vrot.lane.b32.xlu0 %v445, 20
  %v447 = vpop.permute.xlu0 %446
  %vm448 = vcmask 326816
  %s449 = scalar_lea.vmem %s1, 32
  %450 = vst.msk [vmem:[%s449] sm:$0xff] %vm448, %v447
  %s451 = scalar_lea.vmem %s0, 7
  %v452 = vld [vmem:[%s451] ss:$24 sm:$0xf]
  %s453 = scalar_lea.vmem %s0, 7
  %v454 = vld [vmem:[%s453] ss:$24 sm:$0xf0]
  %vm455 = vcmask 1047556
  %v456 = vsel %vm455, %v454, %v452
  %457 = vrot.lane.b32.xlu0 %v456, 12
  %v458 = vpop.permute.xlu0 %457
  %vm459 = vcmask 261216
  %s460 = scalar_lea.vmem %s1, 8
  %461 = vst.msk [vmem:[%s460] sm:$0xff] %vm459, %v458
  %s462 = scalar_lea.vmem %s0, 199
  %v463 = vld [vmem:[%s462] ss:$24 sm:$0xf]
  %s464 = scalar_lea.vmem %s0, 199
  %v465 = vld [vmem:[%s464] ss:$24 sm:$0xf0]
  %vm466 = vcmask 1047556
  %v467 = vsel %vm466, %v465, %v463
  %468 = vrot.lane.b32.xlu0 %v467, 12
  %v469 = vpop.permute.xlu0 %468
  %vm470 = vcmask 261216
  %s471 = scalar_lea.vmem %s1, 40
  %472 = vst.msk [vmem:[%s471] sm:$0xff] %vm470, %v469
  %s473 = scalar_lea.vmem %s0, 13
  %v474 = vld [vmem:[%s473] ss:$24 sm:$0xf]
  %s475 = scalar_lea.vmem %s0, 13
  %v476 = vld [vmem:[%s475] ss:$24 sm:$0xf0]
  %vm477 = vcmask 1047556
  %v478 = vsel %vm477, %v476, %v474
  %479 = vrot.lane.b32.xlu0 %v478, 4
  %v480 = vpop.permute.xlu0 %479
  %vm481 = vcmask 195616
  %s482 = scalar_lea.vmem %s1, 16
  %483 = vst.msk [vmem:[%s482] sm:$0xff] %vm481, %v480
  %s484 = scalar_lea.vmem %s0, 205
  %v485 = vld [vmem:[%s484] ss:$24 sm:$0xf]
  %s486 = scalar_lea.vmem %s0, 205
  %v487 = vld [vmem:[%s486] ss:$24 sm:$0xf0]
  %vm488 = vcmask 1047556
  %v489 = vsel %vm488, %v487, %v485
  %490 = vrot.lane.b32.xlu0 %v489, 4
  %v491 = vpop.permute.xlu0 %490
  %vm492 = vcmask 195616
  %s493 = scalar_lea.vmem %s1, 48
  %494 = vst.msk [vmem:[%s493] sm:$0xff] %vm492, %v491

// kernel: squeeze.5
$region0: #{squeeze.5}
  %s0 = inlined_call_operand.vmem [shape: f32[15,20,20], index: 0, kind: input, shape index: {}]
  %s1 = inlined_call_operand.vmem [shape: f32[15,400], index: 1, kind: output, shape index: {}]
  %v2 = vld [vmem:[%s0] ss:$24 sm:$0xf]
  %v3 = vld [vmem:[%s0] ss:$24 sm:$0xf0]
  %vm4 = vcmask 1047556
  %v5 = vsel %vm4, %v3, %v2
  %vm6 = vcmask 162816
  %7 = vst.msk [vmem:[%s1] sm:$0xff] %vm6, %v5
  %s8 = scalar_lea.vmem %s0, 192
  %v9 = vld [vmem:[%s8] ss:$24 sm:$0xf]
  %s10 = scalar_lea.vmem %s0, 192
  %v11 = vld [vmem:[%s10] ss:$24 sm:$0x70]
  %vm12 = vcmask 1046532
  %v13 = vsel %vm12, %v11, %v9
  %vm14 = vcmask 162816
  %s15 = scalar_lea.vmem %s1, 32
  %16 = vst.msk [vmem:[%s15] sm:$0x7f] %vm14, %v13
  %s17 = scalar_lea.vmem %s0, 19
  %v18 = vld [vmem:[%s17] ss:$24 sm:$0xf]
  %s19 = scalar_lea.vmem %s0, 19
  %v20 = vld [vmem:[%s19] ss:$24 sm:$0xf0]
  %vm21 = vcmask 1047556
  %v22 = vsel %vm21, %v20, %v18
  %s23 = scalar_lea.vmem %s0, 19
  %v24 = vld [vmem:[%s23] ss:$24 sm:$0xf]
  %s25 = scalar_lea.vmem %s0, 19
  %v26 = vld [vmem:[%s25] ss:$24 sm:$0xf0]
  %vm27 = vcmask 1047556
  %v28 = vsel %vm27, %v26, %v24
  %vm29 = vcmask 31744
  %v30 = vsel %vm29, %v28, %v22
  %31 = vrot.lane.b32.xlu0 %v30, 124
  %v32 = vpop.permute.xlu0 %31
  %vm33 = vcmask 130048
  %s34 = scalar_lea.vmem %s1, 24
  %35 = vst.msk [vmem:[%s34] sm:$0xff] %vm33, %v32
  %vm36 = vcmask 1048544
  %s37 = scalar_lea.vmem %s1, 16
  %38 = vst.msk [vmem:[%s37] sm:$0xff] %vm36, %v32
  %s39 = scalar_lea.vmem %s0, 211
  %v40 = vld [vmem:[%s39] ss:$24 sm:$0xf]
  %s41 = scalar_lea.vmem %s0, 211
  %v42 = vld [vmem:[%s41] ss:$24 sm:$0x70]
  %vm43 = vcmask 1046532
  %v44 = vsel %vm43, %v42, %v40
  %s45 = scalar_lea.vmem %s0, 211
  %v46 = vld [vmem:[%s45] ss:$24 sm:$0xf]
  %s47 = scalar_lea.vmem %s0, 211
  %v48 = vld [vmem:[%s47] ss:$24 sm:$0x70]
  %vm49 = vcmask 1046532
  %v50 = vsel %vm49, %v48, %v46
  %vm51 = vcmask 31744
  %v52 = vsel %vm51, %v50, %v44
  %53 = vrot.lane.b32.xlu0 %v52, 124
  %v54 = vpop.permute.xlu0 %53
  %vm55 = vcmask 130048
  %s56 = scalar_lea.vmem %s1, 56
  %57 = vst.msk [vmem:[%s56] sm:$0x7f] %vm55, %v54
  %vm58 = vcmask 1048544
  %s59 = scalar_lea.vmem %s1, 48
  %60 = vst.msk [vmem:[%s59] sm:$0x7f] %vm58, %v54
  %s61 = scalar_lea.vmem %s0, 6
  %v62 = vld [vmem:[%s61] ss:$24 sm:$0xf]
  %s63 = scalar_lea.vmem %s0, 6
  %v64 = vld [vmem:[%s63] ss:$24 sm:$0xf0]
  %vm65 = vcmask 1047556
  %v66 = vsel %vm65, %v64, %v62
  %s67 = scalar_lea.vmem %s0, 6
  %v68 = vld [vmem:[%s67] ss:$24 sm:$0xf]
  %s69 = scalar_lea.vmem %s0, 6
  %v70 = vld [vmem:[%s69] ss:$24 sm:$0xf0]
  %vm71 = vcmask 1047556
  %v72 = vsel %vm71, %v70, %v68
  %vm73 = vcmask 64512
  %v74 = vsel %vm73, %v72, %v66
  %75 = vrot.lane.b32.xlu0 %v74, 120
  %v76 = vpop.permute.xlu0 %75
  %vm77 = vcmask 97280
  %s78 = scalar_lea.vmem %s1, 8
  %79 = vst.msk [vmem:[%s78] sm:$0xff] %vm77, %v76
  %vm80 = vcmask 1048512
  %81 = vst.msk [vmem:[%s1] sm:$0xff] %vm80, %v76
  %s82 = scalar_lea.vmem %s0, 198
  %v83 = vld [vmem:[%s82] ss:$24 sm:$0xf]
  %s84 = scalar_lea.vmem %s0, 198
  %v85 = vld [vmem:[%s84] ss:$24 sm:$0x70]
  %vm86 = vcmask 1046532
  %v87 = vsel %vm86, %v85, %v83
  %s88 = scalar_lea.vmem %s0, 198
  %v89 = vld [vmem:[%s88] ss:$24 sm:$0xf]
  %s90 = scalar_lea.vmem %s0, 198
  %v91 = vld [vmem:[%s90] ss:$24 sm:$0x70]
  %vm92 = vcmask 1046532
  %v93 = vsel %vm92, %v91, %v89
  %vm94 = vcmask 64512
  %v95 = vsel %vm94, %v93, %v87
  %96 = vrot.lane.b32.xlu0 %v95, 120
  %v97 = vpop.permute.xlu0 %96
  %vm98 = vcmask 97280
  %s99 = scalar_lea.vmem %s1, 40
  %100 = vst.msk [vmem:[%s99] sm:$0x7f] %vm98, %v97
  %vm101 = vcmask 1048512
  %s102 = scalar_lea.vmem %s1, 32
  %103 = vst.msk [vmem:[%s102] sm:$0x7f] %vm101, %v97
  %s104 = scalar_lea.vmem %s0, 12
  %v105 = vld [vmem:[%s104] ss:$24 sm:$0xf]
  %s106 = scalar_lea.vmem %s0, 12
  %v107 = vld [vmem:[%s106] ss:$24 sm:$0xf0]
  %vm108 = vcmask 1047556
  %v109 = vsel %vm108, %v107, %v105
  %s110 = scalar_lea.vmem %s0, 12
  %v111 = vld [vmem:[%s110] ss:$24 sm:$0xf]
  %s112 = scalar_lea.vmem %s0, 12
  %v113 = vld [vmem:[%s112] ss:$24 sm:$0xf0]
  %vm114 = vcmask 1047556
  %v115 = vsel %vm114, %v113, %v111
  %vm116 = vcmask 130048
  %v117 = vsel %vm116, %v115, %v109
  %118 = vrot.lane.b32.xlu0 %v117, 112
  %v119 = vpop.permute.xlu0 %118
  %vm120 = vcmask 31744
  %s121 = scalar_lea.vmem %s1, 16
  %122 = vst.msk [vmem:[%s121] sm:$0xff] %vm120, %v119
  %vm123 = vcmask 1048448
  %s124 = scalar_lea.vmem %s1, 8
  %125 = vst.msk [vmem:[%s124] sm:$0xff] %vm123, %v119
  %s126 = scalar_lea.vmem %s0, 204
  %v127 = vld [vmem:[%s126] ss:$24 sm:$0xf]
  %s128 = scalar_lea.vmem %s0, 204
  %v129 = vld [vmem:[%s128] ss:$24 sm:$0x70]
  %vm130 = vcmask 1046532
  %v131 = vsel %vm130, %v129, %v127
  %s132 = scalar_lea.vmem %s0, 204
  %v133 = vld [vmem:[%s132] ss:$24 sm:$0xf]
  %s134 = scalar_lea.vmem %s0, 204
  %v135 = vld [vmem:[%s134] ss:$24 sm:$0x70]
  %vm136 = vcmask 1046532
  %v137 = vsel %vm136, %v135, %v133
  %vm138 = vcmask 130048
  %v139 = vsel %vm138, %v137, %v131
  %140 = vrot.lane.b32.xlu0 %v139, 112
  %v141 = vpop.permute.xlu0 %140
  %vm142 = vcmask 31744
  %s143 = scalar_lea.vmem %s1, 48
  %144 = vst.msk [vmem:[%s143] sm:$0x7f] %vm142, %v141
  %vm145 = vcmask 1048448
  %s146 = scalar_lea.vmem %s1, 40
  %147 = vst.msk [vmem:[%s146] sm:$0x7f] %vm145, %v141
  %s148 = scalar_lea.vmem %s0, 18
  %v149 = vld [vmem:[%s148] ss:$24 sm:$0xf]
  %s150 = scalar_lea.vmem %s0, 18
  %v151 = vld [vmem:[%s150] ss:$24 sm:$0xf0]
  %vm152 = vcmask 1047556
  %v153 = vsel %vm152, %v151, %v149
  %154 = vrot.lane.b32.xlu0 %v153, 104
  %v155 = vpop.permute.xlu0 %154
  %vm156 = vcmask 1015616
  %s157 = scalar_lea.vmem %s1, 16
  %158 = vst.msk [vmem:[%s157] sm:$0xff] %vm156, %v155
  %s159 = scalar_lea.vmem %s0, 210
  %v160 = vld [vmem:[%s159] ss:$24 sm:$0xf]
  %s161 = scalar_lea.vmem %s0, 210
  %v162 = vld [vmem:[%s161] ss:$24 sm:$0x70]
  %vm163 = vcmask 1046532
  %v164 = vsel %vm163, %v162, %v160
  %165 = vrot.lane.b32.xlu0 %v164, 104
  %v166 = vpop.permute.xlu0 %165
  %vm167 = vcmask 1015616
  %s168 = scalar_lea.vmem %s1, 48
  %169 = vst.msk [vmem:[%s168] sm:$0x7f] %vm167, %v166
  %s170 = scalar_lea.vmem %s0, 5
  %v171 = vld [vmem:[%s170] ss:$24 sm:$0xf]
  %s172 = scalar_lea.vmem %s0, 5
  %v173 = vld [vmem:[%s172] ss:$24 sm:$0xf0]
  %vm174 = vcmask 1047556
  %v175 = vsel %vm174, %v173, %v171
  %176 = vrot.lane.b32.xlu0 %v175, 100
  %v177 = vpop.permute.xlu0 %176
  %vm178 = vcmask 982816
  %179 = vst.msk [vmem:[%s1] sm:$0xff] %vm178, %v177
  %s180 = scalar_lea.vmem %s0, 197
  %v181 = vld [vmem:[%s180] ss:$24 sm:$0xf]
  %s182 = scalar_lea.vmem %s0, 197
  %v183 = vld [vmem:[%s182] ss:$24 sm:$0x70]
  %vm184 = vcmask 1046532
  %v185 = vsel %vm184, %v183, %v181
  %186 = vrot.lane.b32.xlu0 %v185, 100
  %v187 = vpop.permute.xlu0 %186
  %vm188 = vcmask 982816
  %s189 = scalar_lea.vmem %s1, 32
  %190 = vst.msk [vmem:[%s189] sm:$0x7f] %vm188, %v187
  %s191 = scalar_lea.vmem %s0, 11
  %v192 = vld [vmem:[%s191] ss:$24 sm:$0xf]
  %s193 = scalar_lea.vmem %s0, 11
  %v194 = vld [vmem:[%s193] ss:$24 sm:$0xf0]
  %vm195 = vcmask 1047556
  %v196 = vsel %vm195, %v194, %v192
  %197 = vrot.lane.b32.xlu0 %v196, 92
  %v198 = vpop.permute.xlu0 %197
  %vm199 = vcmask 917216
  %s200 = scalar_lea.vmem %s1, 8
  %201 = vst.msk [vmem:[%s200] sm:$0xff] %vm199, %v198
  %s202 = scalar_lea.vmem %s0, 203
  %v203 = vld [vmem:[%s202] ss:$24 sm:$0xf]
  %s204 = scalar_lea.vmem %s0, 203
  %v205 = vld [vmem:[%s204] ss:$24 sm:$0x70]
  %vm206 = vcmask 1046532
  %v207 = vsel %vm206, %v205, %v203
  %208 = vrot.lane.b32.xlu0 %v207, 92
  %v209 = vpop.permute.xlu0 %208
  %vm210 = vcmask 917216
  %s211 = scalar_lea.vmem %s1, 40
  %212 = vst.msk [vmem:[%s211] sm:$0x7f] %vm210, %v209
  %s213 = scalar_lea.vmem %s0, 17
  %v214 = vld [vmem:[%s213] ss:$24 sm:$0xf]
  %s215 = scalar_lea.vmem %s0, 17
  %v216 = vld [vmem:[%s215] ss:$24 sm:$0xf0]
  %vm217 = vcmask 1047556
  %v218 = vsel %vm217, %v216, %v214
  %219 = vrot.lane.b32.xlu0 %v218, 84
  %v220 = vpop.permute.xlu0 %219
  %vm221 = vcmask 851616
  %s222 = scalar_lea.vmem %s1, 16
  %223 = vst.msk [vmem:[%s222] sm:$0xff] %vm221, %v220
  %s224 = scalar_lea.vmem %s0, 209
  %v225 = vld [vmem:[%s224] ss:$24 sm:$0xf]
  %s226 = scalar_lea.vmem %s0, 209
  %v227 = vld [vmem:[%s226] ss:$24 sm:$0x70]
  %vm228 = vcmask 1046532
  %v229 = vsel %vm228, %v227, %v225
  %230 = vrot.lane.b32.xlu0 %v229, 84
  %v231 = vpop.permute.xlu0 %230
  %vm232 = vcmask 851616
  %s233 = scalar_lea.vmem %s1, 48
  %234 = vst.msk [vmem:[%s233] sm:$0x7f] %vm232, %v231
  %s235 = scalar_lea.vmem %s0, 4
  %v236 = vld [vmem:[%s235] ss:$24 sm:$0xf]
  %s237 = scalar_lea.vmem %s0, 4
  %v238 = vld [vmem:[%s237] ss:$24 sm:$0xf0]
  %vm239 = vcmask 1047556
  %v240 = vsel %vm239, %v238, %v236
  %241 = vrot.lane.b32.xlu0 %v240, 80
  %v242 = vpop.permute.xlu0 %241
  %vm243 = vcmask 818816
  %244 = vst.msk [vmem:[%s1] sm:$0xff] %vm243, %v242
  %s245 = scalar_lea.vmem %s0, 196
  %v246 = vld [vmem:[%s245] ss:$24 sm:$0xf]
  %s247 = scalar_lea.vmem %s0, 196
  %v248 = vld [vmem:[%s247] ss:$24 sm:$0x70]
  %vm249 = vcmask 1046532
  %v250 = vsel %vm249, %v248, %v246
  %251 = vrot.lane.b32.xlu0 %v250, 80
  %v252 = vpop.permute.xlu0 %251
  %vm253 = vcmask 818816
  %s254 = scalar_lea.vmem %s1, 32
  %255 = vst.msk [vmem:[%s254] sm:$0x7f] %vm253, %v252
  %s256 = scalar_lea.vmem %s0, 10
  %v257 = vld [vmem:[%s256] ss:$24 sm:$0xf]
  %s258 = scalar_lea.vmem %s0, 10
  %v259 = vld [vmem:[%s258] ss:$24 sm:$0xf0]
  %vm260 = vcmask 1047556
  %v261 = vsel %vm260, %v259, %v257
  %262 = vrot.lane.b32.xlu0 %v261, 72
  %v263 = vpop.permute.xlu0 %262
  %vm264 = vcmask 753216
  %s265 = scalar_lea.vmem %s1, 8
  %266 = vst.msk [vmem:[%s265] sm:$0xff] %vm264, %v263
  %s267 = scalar_lea.vmem %s0, 202
  %v268 = vld [vmem:[%s267] ss:$24 sm:$0xf]
  %s269 = scalar_lea.vmem %s0, 202
  %v270 = vld [vmem:[%s269] ss:$24 sm:$0x70]
  %vm271 = vcmask 1046532
  %v272 = vsel %vm271, %v270, %v268
  %273 = vrot.lane.b32.xlu0 %v272, 72
  %v274 = vpop.permute.xlu0 %273
  %vm275 = vcmask 753216
  %s276 = scalar_lea.vmem %s1, 40
  %277 = vst.msk [vmem:[%s276] sm:$0x7f] %vm275, %v274
  %s278 = scalar_lea.vmem %s0, 16
  %v279 = vld [vmem:[%s278] ss:$24 sm:$0xf]
  %s280 = scalar_lea.vmem %s0, 16
  %v281 = vld [vmem:[%s280] ss:$24 sm:$0xf0]
  %vm282 = vcmask 1047556
  %v283 = vsel %vm282, %v281, %v279
  %284 = vrot.lane.b32.xlu0 %v283, 64
  %v285 = vpop.permute.xlu0 %284
  %vm286 = vcmask 687616
  %s287 = scalar_lea.vmem %s1, 16
  %288 = vst.msk [vmem:[%s287] sm:$0xff] %vm286, %v285
  %s289 = scalar_lea.vmem %s0, 208
  %v290 = vld [vmem:[%s289] ss:$24 sm:$0xf]
  %s291 = scalar_lea.vmem %s0, 208
  %v292 = vld [vmem:[%s291] ss:$24 sm:$0x70]
  %vm293 = vcmask 1046532
  %v294 = vsel %vm293, %v292, %v290
  %295 = vrot.lane.b32.xlu0 %v294, 64
  %v296 = vpop.permute.xlu0 %295
  %vm297 = vcmask 687616
  %s298 = scalar_lea.vmem %s1, 48
  %299 = vst.msk [vmem:[%s298] sm:$0x7f] %vm297, %v296
  %s300 = scalar_lea.vmem %s0, 3
  %v301 = vld [vmem:[%s300] ss:$24 sm:$0xf]
  %s302 = scalar_lea.vmem %s0, 3
  %v303 = vld [vmem:[%s302] ss:$24 sm:$0xf0]
  %vm304 = vcmask 1047556
  %v305 = vsel %vm304, %v303, %v301
  %306 = vrot.lane.b32.xlu0 %v305, 60
  %v307 = vpop.permute.xlu0 %306
  %vm308 = vcmask 654816
  %309 = vst.msk [vmem:[%s1] sm:$0xff] %vm308, %v307
  %s310 = scalar_lea.vmem %s0, 195
  %v311 = vld [vmem:[%s310] ss:$24 sm:$0xf]
  %s312 = scalar_lea.vmem %s0, 195
  %v313 = vld [vmem:[%s312] ss:$24 sm:$0x70]
  %vm314 = vcmask 1046532
  %v315 = vsel %vm314, %v313, %v311
  %316 = vrot.lane.b32.xlu0 %v315, 60
  %v317 = vpop.permute.xlu0 %316
  %vm318 = vcmask 654816
  %s319 = scalar_lea.vmem %s1, 32
  %320 = vst.msk [vmem:[%s319] sm:$0x7f] %vm318, %v317
  %s321 = scalar_lea.vmem %s0, 9
  %v322 = vld [vmem:[%s321] ss:$24 sm:$0xf]
  %s323 = scalar_lea.vmem %s0, 9
  %v324 = vld [vmem:[%s323] ss:$24 sm:$0xf0]
  %vm325 = vcmask 1047556
  %v326 = vsel %vm325, %v324, %v322
  %327 = vrot.lane.b32.xlu0 %v326, 52
  %v328 = vpop.permute.xlu0 %327
  %vm329 = vcmask 589216
  %s330 = scalar_lea.vmem %s1, 8
  %331 = vst.msk [vmem:[%s330] sm:$0xff] %vm329, %v328
  %s332 = scalar_lea.vmem %s0, 201
  %v333 = vld [vmem:[%s332] ss:$24 sm:$0xf]
  %s334 = scalar_lea.vmem %s0, 201
  %v335 = vld [vmem:[%s334] ss:$24 sm:$0x70]
  %vm336 = vcmask 1046532
  %v337 = vsel %vm336, %v335, %v333
  %338 = vrot.lane.b32.xlu0 %v337, 52
  %v339 = vpop.permute.xlu0 %338
  %vm340 = vcmask 589216
  %s341 = scalar_lea.vmem %s1, 40
  %342 = vst.msk [vmem:[%s341] sm:$0x7f] %vm340, %v339
  %s343 = scalar_lea.vmem %s0, 15
  %v344 = vld [vmem:[%s343] ss:$24 sm:$0xf]
  %s345 = scalar_lea.vmem %s0, 15
  %v346 = vld [vmem:[%s345] ss:$24 sm:$0xf0]
  %vm347 = vcmask 1047556
  %v348 = vsel %vm347, %v346, %v344
  %349 = vrot.lane.b32.xlu0 %v348, 44
  %v350 = vpop.permute.xlu0 %349
  %vm351 = vcmask 523616
  %s352 = scalar_lea.vmem %s1, 16
  %353 = vst.msk [vmem:[%s352] sm:$0xff] %vm351, %v350
  %s354 = scalar_lea.vmem %s0, 207
  %v355 = vld [vmem:[%s354] ss:$24 sm:$0xf]
  %s356 = scalar_lea.vmem %s0, 207
  %v357 = vld [vmem:[%s356] ss:$24 sm:$0x70]
  %vm358 = vcmask 1046532
  %v359 = vsel %vm358, %v357, %v355
  %360 = vrot.lane.b32.xlu0 %v359, 44
  %v361 = vpop.permute.xlu0 %360
  %vm362 = vcmask 523616
  %s363 = scalar_lea.vmem %s1, 48
  %364 = vst.msk [vmem:[%s363] sm:$0x7f] %vm362, %v361
  %s365 = scalar_lea.vmem %s0, 2
  %v366 = vld [vmem:[%s365] ss:$24 sm:$0xf]
  %s367 = scalar_lea.vmem %s0, 2
  %v368 = vld [vmem:[%s367] ss:$24 sm:$0xf0]
  %vm369 = vcmask 1047556
  %v370 = vsel %vm369, %v368, %v366
  %371 = vrot.lane.b32.xlu0 %v370, 40
  %v372 = vpop.permute.xlu0 %371
  %vm373 = vcmask 490816
  %374 = vst.msk [vmem:[%s1] sm:$0xff] %vm373, %v372
  %s375 = scalar_lea.vmem %s0, 194
  %v376 = vld [vmem:[%s375] ss:$24 sm:$0xf]
  %s377 = scalar_lea.vmem %s0, 194
  %v378 = vld [vmem:[%s377] ss:$24 sm:$0x70]
  %vm379 = vcmask 1046532
  %v380 = vsel %vm379, %v378, %v376
  %381 = vrot.lane.b32.xlu0 %v380, 40
  %v382 = vpop.permute.xlu0 %381
  %vm383 = vcmask 490816
  %s384 = scalar_lea.vmem %s1, 32
  %385 = vst.msk [vmem:[%s384] sm:$0x7f] %vm383, %v382
  %s386 = scalar_lea.vmem %s0, 8
  %v387 = vld [vmem:[%s386] ss:$24 sm:$0xf]
  %s388 = scalar_lea.vmem %s0, 8
  %v389 = vld [vmem:[%s388] ss:$24 sm:$0xf0]
  %vm390 = vcmask 1047556
  %v391 = vsel %vm390, %v389, %v387
  %392 = vrot.lane.b32.xlu0 %v391, 32
  %v393 = vpop.permute.xlu0 %392
  %vm394 = vcmask 425216
  %s395 = scalar_lea.vmem %s1, 8
  %396 = vst.msk [vmem:[%s395] sm:$0xff] %vm394, %v393
  %s397 = scalar_lea.vmem %s0, 200
  %v398 = vld [vmem:[%s397] ss:$24 sm:$0xf]
  %s399 = scalar_lea.vmem %s0, 200
  %v400 = vld [vmem:[%s399] ss:$24 sm:$0x70]
  %vm401 = vcmask 1046532
  %v402 = vsel %vm401, %v400, %v398
  %403 = vrot.lane.b32.xlu0 %v402, 32
  %v404 = vpop.permute.xlu0 %403
  %vm405 = vcmask 425216
  %s406 = scalar_lea.vmem %s1, 40
  %407 = vst.msk [vmem:[%s406] sm:$0x7f] %vm405, %v404
  %s408 = scalar_lea.vmem %s0, 14
  %v409 = vld [vmem:[%s408] ss:$24 sm:$0xf]
  %s410 = scalar_lea.vmem %s0, 14
  %v411 = vld [vmem:[%s410] ss:$24 sm:$0xf0]
  %vm412 = vcmask 1047556
  %v413 = vsel %vm412, %v411, %v409
  %414 = vrot.lane.b32.xlu0 %v413, 24
  %v415 = vpop.permute.xlu0 %414
  %vm416 = vcmask 359616
  %s417 = scalar_lea.vmem %s1, 16
  %418 = vst.msk [vmem:[%s417] sm:$0xff] %vm416, %v415
  %s419 = scalar_lea.vmem %s0, 206
  %v420 = vld [vmem:[%s419] ss:$24 sm:$0xf]
  %s421 = scalar_lea.vmem %s0, 206
  %v422 = vld [vmem:[%s421] ss:$24 sm:$0x70]
  %vm423 = vcmask 1046532
  %v424 = vsel %vm423, %v422, %v420
  %425 = vrot.lane.b32.xlu0 %v424, 24
  %v426 = vpop.permute.xlu0 %425
  %vm427 = vcmask 359616
  %s428 = scalar_lea.vmem %s1, 48
  %429 = vst.msk [vmem:[%s428] sm:$0x7f] %vm427, %v426
  %s430 = scalar_lea.vmem %s0, 1
  %v431 = vld [vmem:[%s430] ss:$24 sm:$0xf]
  %s432 = scalar_lea.vmem %s0, 1
  %v433 = vld [vmem:[%s432] ss:$24 sm:$0xf0]
  %vm434 = vcmask 1047556
  %v435 = vsel %vm434, %v433, %v431
  %436 = vrot.lane.b32.xlu0 %v435, 20
  %v437 = vpop.permute.xlu0 %436
  %vm438 = vcmask 326816
  %439 = vst.msk [vmem:[%s1] sm:$0xff] %vm438, %v437
  %s440 = scalar_lea.vmem %s0, 193
  %v441 = vld [vmem:[%s440] ss:$24 sm:$0xf]
  %s442 = scalar_lea.vmem %s0, 193
  %v443 = vld [vmem:[%s442] ss:$24 sm:$0x70]
  %vm444 = vcmask 1046532
  %v445 = vsel %vm444, %v443, %v441
  %446 = vrot.lane.b32.xlu0 %v445, 20
  %v447 = vpop.permute.xlu0 %446
  %vm448 = vcmask 326816
  %s449 = scalar_lea.vmem %s1, 32
  %450 = vst.msk [vmem:[%s449] sm:$0x7f] %vm448, %v447
  %s451 = scalar_lea.vmem %s0, 7
  %v452 = vld [vmem:[%s451] ss:$24 sm:$0xf]
  %s453 = scalar_lea.vmem %s0, 7
  %v454 = vld [vmem:[%s453] ss:$24 sm:$0xf0]
  %vm455 = vcmask 1047556
  %v456 = vsel %vm455, %v454, %v452
  %457 = vrot.lane.b32.xlu0 %v456, 12
  %v458 = vpop.permute.xlu0 %457
  %vm459 = vcmask 261216
  %s460 = scalar_lea.vmem %s1, 8
  %461 = vst.msk [vmem:[%s460] sm:$0xff] %vm459, %v458
  %s462 = scalar_lea.vmem %s0, 199
  %v463 = vld [vmem:[%s462] ss:$24 sm:$0xf]
  %s464 = scalar_lea.vmem %s0, 199
  %v465 = vld [vmem:[%s464] ss:$24 sm:$0x70]
  %vm466 = vcmask 1046532
  %v467 = vsel %vm466, %v465, %v463
  %468 = vrot.lane.b32.xlu0 %v467, 12
  %v469 = vpop.permute.xlu0 %468
  %vm470 = vcmask 261216
  %s471 = scalar_lea.vmem %s1, 40
  %472 = vst.msk [vmem:[%s471] sm:$0x7f] %vm470, %v469
  %s473 = scalar_lea.vmem %s0, 13
  %v474 = vld [vmem:[%s473] ss:$24 sm:$0xf]
  %s475 = scalar_lea.vmem %s0, 13
  %v476 = vld [vmem:[%s475] ss:$24 sm:$0xf0]
  %vm477 = vcmask 1047556
  %v478 = vsel %vm477, %v476, %v474
  %479 = vrot.lane.b32.xlu0 %v478, 4
  %v480 = vpop.permute.xlu0 %479
  %vm481 = vcmask 195616
  %s482 = scalar_lea.vmem %s1, 16
  %483 = vst.msk [vmem:[%s482] sm:$0xff] %vm481, %v480
  %s484 = scalar_lea.vmem %s0, 205
  %v485 = vld [vmem:[%s484] ss:$24 sm:$0xf]
  %s486 = scalar_lea.vmem %s0, 205
  %v487 = vld [vmem:[%s486] ss:$24 sm:$0x70]
  %vm488 = vcmask 1046532
  %v489 = vsel %vm488, %v487, %v485
  %490 = vrot.lane.b32.xlu0 %v489, 4
  %v491 = vpop.permute.xlu0 %490
  %vm492 = vcmask 195616
  %s493 = scalar_lea.vmem %s1, 48
  %494 = vst.msk [vmem:[%s493] sm:$0x7f] %vm492, %v491

// kernel: tile.7
$region0: #{tile.7}
  %s0 = inlined_call_operand.vmem [shape: f32[20,20], index: 0, kind: input, shape index: {}]
  %s1 = inlined_call_operand.vmem [shape: f32[1,400], index: 1, kind: output, shape index: {}]
  $region1: #{tile.7} parent=0
    #allocation0 [shape = 'u8[16384]{0}', space=vmem, size = 0x4000, scoped, tag = 'scoped mem for output reshape']
    %v2 = vld [vmem:[%s0] sm:$0x1]
    %vm3 = vcmask 162816
    %4 = vst.msk [vmem:[#allocation0] sm:$0x1] %vm3, %v2
    %s5 = scalar_lea.vmem %s0, 19
    %v6 = vld [vmem:[%s5] sm:$0x1]
    %s7 = scalar_lea.vmem %s0, 19
    %v8 = vld [vmem:[%s7] sm:$0x1]
    %vm9 = vcmask 31744
    %v10 = vsel %vm9, %v8, %v6
    %11 = vrot.lane.b32.xlu0 %v10, 124
    %v12 = vpop.permute.xlu0 %11
    %vm13 = vcmask 130048
    %s14 = scalar_lea.vmem [#allocation0], 24
    %15 = vst.msk [vmem:[%s14] sm:$0x1] %vm13, %v12
    %vm16 = vcmask 1048544
    %s17 = scalar_lea.vmem [#allocation0], 16
    %18 = vst.msk [vmem:[%s17] sm:$0x1] %vm16, %v12
    %s19 = scalar_lea.vmem %s0, 6
    %v20 = vld [vmem:[%s19] sm:$0x1]
    %s21 = scalar_lea.vmem %s0, 6
    %v22 = vld [vmem:[%s21] sm:$0x1]
    %vm23 = vcmask 64512
    %v24 = vsel %vm23, %v22, %v20
    %25 = vrot.lane.b32.xlu0 %v24, 120
    %v26 = vpop.permute.xlu0 %25
    %vm27 = vcmask 97280
    %s28 = scalar_lea.vmem [#allocation0], 8
    %29 = vst.msk [vmem:[%s28] sm:$0x1] %vm27, %v26
    %vm30 = vcmask 1048512
    %31 = vst.msk [vmem:[#allocation0] sm:$0x1] %vm30, %v26
    %s32 = scalar_lea.vmem %s0, 12
    %v33 = vld [vmem:[%s32] sm:$0x1]
    %s34 = scalar_lea.vmem %s0, 12
    %v35 = vld [vmem:[%s34] sm:$0x1]
    %vm36 = vcmask 130048
    %v37 = vsel %vm36, %v35, %v33
    %38 = vrot.lane.b32.xlu0 %v37, 112
    %v39 = vpop.permute.xlu0 %38
    %vm40 = vcmask 31744
    %s41 = scalar_lea.vmem [#allocation0], 16
    %42 = vst.msk [vmem:[%s41] sm:$0x1] %vm40, %v39
    %vm43 = vcmask 1048448
    %s44 = scalar_lea.vmem [#allocation0], 8
    %45 = vst.msk [vmem:[%s44] sm:$0x1] %vm43, %v39
    %s46 = scalar_lea.vmem %s0, 18
    %v47 = vld [vmem:[%s46] sm:$0x1]
    %48 = vrot.lane.b32.xlu0 %v47, 104
    %v49 = vpop.permute.xlu0 %48
    %vm50 = vcmask 1015616
    %s51 = scalar_lea.vmem [#allocation0], 16
    %52 = vst.msk [vmem:[%s51] sm:$0x1] %vm50, %v49
    %s53 = scalar_lea.vmem %s0, 5
    %v54 = vld [vmem:[%s53] sm:$0x1]
    %55 = vrot.lane.b32.xlu0 %v54, 100
    %v56 = vpop.permute.xlu0 %55
    %vm57 = vcmask 982816
    %58 = vst.msk [vmem:[#allocation0] sm:$0x1] %vm57, %v56
    %s59 = scalar_lea.vmem %s0, 11
    %v60 = vld [vmem:[%s59] sm:$0x1]
    %61 = vrot.lane.b32.xlu0 %v60, 92
    %v62 = vpop.permute.xlu0 %61
    %vm63 = vcmask 917216
    %s64 = scalar_lea.vmem [#allocation0], 8
    %65 = vst.msk [vmem:[%s64] sm:$0x1] %vm63, %v62
    %s66 = scalar_lea.vmem %s0, 17
    %v67 = vld [vmem:[%s66] sm:$0x1]
    %68 = vrot.lane.b32.xlu0 %v67, 84
    %v69 = vpop.permute.xlu0 %68
    %vm70 = vcmask 851616
    %s71 = scalar_lea.vmem [#allocation0], 16
    %72 = vst.msk [vmem:[%s71] sm:$0x1] %vm70, %v69
    %s73 = scalar_lea.vmem %s0, 4
    %v74 = vld [vmem:[%s73] sm:$0x1]
    %75 = vrot.lane.b32.xlu0 %v74, 80
    %v76 = vpop.permute.xlu0 %75
    %vm77 = vcmask 818816
    %78 = vst.msk [vmem:[#allocation0] sm:$0x1] %vm77, %v76
    %s79 = scalar_lea.vmem %s0, 10
    %v80 = vld [vmem:[%s79] sm:$0x1]
    %81 = vrot.lane.b32.xlu0 %v80, 72
    %v82 = vpop.permute.xlu0 %81
    %vm83 = vcmask 753216
    %s84 = scalar_lea.vmem [#allocation0], 8
    %85 = vst.msk [vmem:[%s84] sm:$0x1] %vm83, %v82
    %s86 = scalar_lea.vmem %s0, 16
    %v87 = vld [vmem:[%s86] sm:$0x1]
    %88 = vrot.lane.b32.xlu0 %v87, 64
    %v89 = vpop.permute.xlu0 %88
    %vm90 = vcmask 687616
    %s91 = scalar_lea.vmem [#allocation0], 16
    %92 = vst.msk [vmem:[%s91] sm:$0x1] %vm90, %v89
    %s93 = scalar_lea.vmem %s0, 3
    %v94 = vld [vmem:[%s93] sm:$0x1]
    %95 = vrot.lane.b32.xlu0 %v94, 60
    %v96 = vpop.permute.xlu0 %95
    %vm97 = vcmask 654816
    %98 = vst.msk [vmem:[#allocation0] sm:$0x1] %vm97, %v96
    %s99 = scalar_lea.vmem %s0, 9
    %v100 = vld [vmem:[%s99] sm:$0x1]
    %101 = vrot.lane.b32.xlu0 %v100, 52
    %v102 = vpop.permute.xlu0 %101
    %vm103 = vcmask 589216
    %s104 = scalar_lea.vmem [#allocation0], 8
    %105 = vst.msk [vmem:[%s104] sm:$0x1] %vm103, %v102
    %s106 = scalar_lea.vmem %s0, 15
    %v107 = vld [vmem:[%s106] sm:$0x1]
    %108 = vrot.lane.b32.xlu0 %v107, 44
    %v109 = vpop.permute.xlu0 %108
    %vm110 = vcmask 523616
    %s111 = scalar_lea.vmem [#allocation0], 16
    %112 = vst.msk [vmem:[%s111] sm:$0x1] %vm110, %v109
    %s113 = scalar_lea.vmem %s0, 2
    %v114 = vld [vmem:[%s113] sm:$0x1]
    %115 = vrot.lane.b32.xlu0 %v114, 40
    %v116 = vpop.permute.xlu0 %115
    %vm117 = vcmask 490816
    %118 = vst.msk [vmem:[#allocation0] sm:$0x1] %vm117, %v116
    %s119 = scalar_lea.vmem %s0, 8
    %v120 = vld [vmem:[%s119] sm:$0x1]
    %121 = vrot.lane.b32.xlu0 %v120, 32
    %v122 = vpop.permute.xlu0 %121
    %vm123 = vcmask 425216
    %s124 = scalar_lea.vmem [#allocation0], 8
    %125 = vst.msk [vmem:[%s124] sm:$0x1] %vm123, %v122
    %s126 = scalar_lea.vmem %s0, 14
    %v127 = vld [vmem:[%s126] sm:$0x1]
    %128 = vrot.lane.b32.xlu0 %v127, 24
    %v129 = vpop.permute.xlu0 %128
    %vm130 = vcmask 359616
    %s131 = scalar_lea.vmem [#allocation0], 16
    %132 = vst.msk [vmem:[%s131] sm:$0x1] %vm130, %v129
    %s133 = scalar_lea.vmem %s0, 1
    %v134 = vld [vmem:[%s133] sm:$0x1]
    %135 = vrot.lane.b32.xlu0 %v134, 20
    %v136 = vpop.permute.xlu0 %135
    %vm137 = vcmask 326816
    %138 = vst.msk [vmem:[#allocation0] sm:$0x1] %vm137, %v136
    %s139 = scalar_lea.vmem %s0, 7
    %v140 = vld [vmem:[%s139] sm:$0x1]
    %141 = vrot.lane.b32.xlu0 %v140, 12
    %v142 = vpop.permute.xlu0 %141
    %vm143 = vcmask 261216
    %s144 = scalar_lea.vmem [#allocation0], 8
    %145 = vst.msk [vmem:[%s144] sm:$0x1] %vm143, %v142
    %s146 = scalar_lea.vmem %s0, 13
    %v147 = vld [vmem:[%s146] sm:$0x1]
    %148 = vrot.lane.b32.xlu0 %v147, 4
    %v149 = vpop.permute.xlu0 %148
    %vm150 = vcmask 195616
    %s151 = scalar_lea.vmem [#allocation0], 16
    %152 = vst.msk [vmem:[%s151] sm:$0x1] %vm150, %v149
    %s154 = ssub.s32 2, 1
    %v155 = vld [vmem:[#allocation0] sm:%s154]
    %s157 = ssub.s32 2, 1
    %158 = vst [vmem:[%s1] sm:%s157] %v155
    %s159 = scalar_lea.vmem [#allocation0], 8
    %v160 = vld [vmem:[%s159] sm:%s154]
    %s162 = ssub.s32 2, 1
    %s163 = scalar_lea.vmem %s1, 1
    %164 = vst [vmem:[%s163] sm:%s162] %v160
    %s165 = scalar_lea.vmem [#allocation0], 16
    %v166 = vld [vmem:[%s165] sm:%s154]
    %s168 = ssub.s32 2, 1
    %s169 = scalar_lea.vmem %s1, 2
    %170 = vst [vmem:[%s169] sm:%s168] %v166
    %s171 = scalar_lea.vmem [#allocation0], 24
    %v172 = vld [vmem:[%s171] sm:%s154]
    %s174 = ssub.s32 2, 1
    %s175 = scalar_lea.vmem %s1, 3
    %176 = vst [vmem:[%s175] sm:%s174] %v172

// kernel: tile.6
$region0: #{tile.6}
  #allocation0 [shape = 's32[1]{0}', space=sflag, size = 0x4, scoped, tag = 'scoped memory for tile.6']
  %s0 = inlined_call_operand.vmem [shape: f32[20], index: 0, kind: input, shape index: {}]
  %s1 = inlined_call_operand.vmem [shape: f32[20,20], index: 1, kind: output, shape index: {}]
  // Predicated region
  $region2: #{tile.6} parent=0 // pred_check
    _
  $region3: #{tile.6} parent=0 // pred_check_branch
    %3 = sbr.rel (0) target = $region5
  $region4: #{tile.6} parent=0 // pred_region
    _
  $region5: #{tile.6} parent=0 // pred_fallthru
    _
  %v4 = vld [vmem:[%s0] ss:$0 sm:$0xff]
  %5 = vst [vmem:[%s1] sm:$0xff] %v4
  %s6 = scalar_lea.vmem %s1, 8
  %7 = vst [vmem:[%s6] sm:$0xff] %v4
  %s8 = scalar_lea.vmem %s1, 16
  %9 = vst [vmem:[%s8] sm:$0xff] %v4

// kernel: model_forward.2
$region0: #{model_forward.2}
  #allocation0 [shape = 'u32[]', space=smem, size = 0x4, offset = 0x4, fixed_abs, tag = 'smem constant byte address 0x4 - core index']
  #allocation1 [shape = 'u32[72,128]{1,0:T(1,128)}', space=vmem, size = 0x9000, scoped, tag = 'internal scratch']
  %s0 = inlined_call_operand.vmem [shape: f32[16,400], index: 0, kind: input, shape index: {}]
  %s1 = inlined_call_operand.vmem [shape: f32[15,1], index: 1, kind: input, shape index: {}]
  %s2 = inlined_call_operand.vmem [shape: f32[15,400], index: 2, kind: input, shape index: {}, may-alias: {2,5}]
  %s3 = inlined_call_operand.vmem [shape: f32[1,400], index: 3, kind: input, shape index: {}]
  %s4 = inlined_call_operand.vmem [shape: f32[15,16,1,1], index: 4, kind: input, shape index: {}]
  %s5 = inlined_call_operand.vmem [shape: f32[15,400], index: 5, kind: output, shape index: {}, may-alias: {2,5}]
  %s6 = sld [smem:[#allocation0]]
  $region30: #{model_forward.2} parent=0
    _
  %s8 = ssub.s32 1, %s6
  %s9 = scalar_select 0, %s8, %s6
  $region1: #{model_forward.2} parent=0
    #allocation2 [shape = 'u8[8192]{0}', space=vmem, size = 0x2000, dematerialized = true, scoped, tag = 'FusionAdapter Buffer %fusion.1 = f32[15,16]{1,0:T(8,128)} fusion(%param_4.1), kind=kLoop, calls=%fused_computation.1.clone']
    // Predicated region
    $region2: #{model_forward.2} parent=1 // pred_check
      _
    $region3: #{model_forward.2} parent=1 // pred_check_branch
      %11 = sbr.rel (0) target = $region5
    $region4: #{model_forward.2} parent=1 // pred_region
      _
    $region5: #{model_forward.2} parent=1 // pred_fallthru
      _
    // Predicated region
    $region6: #{model_forward.2} parent=1 // pred_check
      _
    $region7: #{model_forward.2} parent=1 // pred_check_branch
      %13 = sbr.rel (0) target = $region9
    $region8: #{model_forward.2} parent=1 // pred_region
      _
    $region9: #{model_forward.2} parent=1 // pred_fallthru
      _
    // Predicated region
    $region10: #{model_forward.2} parent=1 // pred_check
      _
    $region11: #{model_forward.2} parent=1 // pred_check_branch
      %15 = sbr.rel (0) target = $region13
    $region12: #{model_forward.2} parent=1 // pred_region
      _
    $region13: #{model_forward.2} parent=1 // pred_fallthru
      _
    // Predicated region
    $region14: #{model_forward.2} parent=1 // pred_check
      _
    $region15: #{model_forward.2} parent=1 // pred_check_branch
      %17 = sbr.rel (0) target = $region17
    $region16: #{model_forward.2} parent=1 // pred_region
      _
    $region17: #{model_forward.2} parent=1 // pred_fallthru
      _
    // Predicated region
    $region18: #{model_forward.2} parent=1 // pred_check
      _
    $region19: #{model_forward.2} parent=1 // pred_check_branch
      %19 = sbr.rel (0) target = $region21
    $region20: #{model_forward.2} parent=1 // pred_region
      _
    $region21: #{model_forward.2} parent=1 // pred_fallthru
      _
    %v20 = vld [vmem:[%s4] sm:$0xff]
    %s22 = ssub.s32 256, 1
    %23 = vst [vmem:[#allocation2] sm:%s22] %v20
    %s24 = scalar_lea.vmem %s4, 8
    %v25 = vld [vmem:[%s24] sm:$0xff]
    %s26 = scalar_lea.vmem [#allocation2], 8
    %s28 = ssub.s32 256, 1
    %29 = vst [vmem:[%s26] sm:%s28] %v25
    %v30 = vld [vmem:[#allocation2] sm:$0xff]
    %v31 = vld [vmem:[#allocation2 + $0x8] sm:$0x7f]
    %v32 = vld [vmem:[%s0] sm:$0xff]
    %v33 = vld [vmem:[%s0 + $0x8] sm:$0xff]
    %v34 = vld [vmem:[%s0 + $0x10] sm:$0xff]
    %v35 = vld [vmem:[%s0 + $0x18] sm:$0xff]
    %v36 = vld [vmem:[%s0 + $0x20] sm:$0xff]
    %v37 = vld [vmem:[%s0 + $0x28] sm:$0xff]
    %v38 = vld [vmem:[%s0 + $0x30] sm:$0xff]
    %v39 = vld [vmem:[%s0 + $0x38] sm:$0xff]
    %v40 = vld [vmem:[%s1] sm:$0xff]
    %v41 = vld [vmem:[%s1 + $0x8] sm:$0x7f]
    %43 = vset.pattern.permute.xlu0 0
    %44 = vperm.xlu0 %43, %v40
    %v45 = vpop.permute.xlu0 %44
    %48 = vset.pattern.permute.xlu0 0
    %49 = vperm.xlu0 %48, %v41
    %v50 = vpop.permute.xlu0 %49
    %vm52 = vcmask 130048
    %v54 = vsel %vm52, %v30, 0
    %v57 = vsel %vm52, %v31, 0
    %59 = vmatpush.msra.mxu0 0.0
    %60 = vmatpush.msra.mxu0 0.0
    %61 = vmatpush.msra.mxu0 0.0
    %62 = vmatpush.msra.mxu0 0.0
    %63 = vmatpush.msra.mxu0 0.0
    %64 = vmatpush.msra.mxu0 0.0
    %65 = vmatpush.msra.mxu0 0.0
    %66 = vmatpush.msra.mxu0 0.0
    %67 = vmatpush.msra.mxu0 0.0
    %68 = vmatpush.msra.mxu0 0.0
    %69 = vmatpush.msra.mxu0 0.0
    %70 = vmatpush.msra.mxu0 0.0
    %71 = vmatpush.msra.mxu0 0.0
    %72 = vmatpush.msra.mxu0 0.0
    %73 = vmatpush.msra.mxu0 %v36
    %74 = vmatpush.msra.mxu0 %v32
    %75 = vmatmul.f32.gmra.mxu0 %v54
    %v76 = vpop.f32.mrf.mxu0
    %v77 = vadd.f32 %v45, %v76
    %78 = vmatmul.f32.gmra.mxu0 %v57
    %v79 = vpop.f32.mrf.mxu0
    %v80 = vadd.f32 %v50, %v79
    %81 = vdwg.mxu0
    %82 = vmatpush.msra.mxu0 0.0
    %83 = vmatpush.msra.mxu0 0.0
    %84 = vmatpush.msra.mxu0 0.0
    %85 = vmatpush.msra.mxu0 0.0
    %86 = vmatpush.msra.mxu0 0.0
    %87 = vmatpush.msra.mxu0 0.0
    %88 = vmatpush.msra.mxu0 0.0
    %89 = vmatpush.msra.mxu0 0.0
    %90 = vmatpush.msra.mxu0 0.0
    %91 = vmatpush.msra.mxu0 0.0
    %92 = vmatpush.msra.mxu0 0.0
    %93 = vmatpush.msra.mxu0 0.0
    %94 = vmatpush.msra.mxu0 0.0
    %95 = vmatpush.msra.mxu0 0.0
    %96 = vmatpush.msra.mxu0 %v37
    %97 = vmatpush.msra.mxu0 %v33
    %98 = vmatmul.f32.gmra.mxu0 %v54
    %v99 = vpop.f32.mrf.mxu0
    %v100 = vadd.f32 %v45, %v99
    %101 = vmatmul.f32.gmra.mxu0 %v57
    %v102 = vpop.f32.mrf.mxu0
    %v103 = vadd.f32 %v50, %v102
    %104 = vdwg.mxu0
    %105 = vmatpush.msra.mxu0 0.0
    %106 = vmatpush.msra.mxu0 0.0
    %107 = vmatpush.msra.mxu0 0.0
    %108 = vmatpush.msra.mxu0 0.0
    %109 = vmatpush.msra.mxu0 0.0
    %110 = vmatpush.msra.mxu0 0.0
    %111 = vmatpush.msra.mxu0 0.0
    %112 = vmatpush.msra.mxu0 0.0
    %113 = vmatpush.msra.mxu0 0.0
    %114 = vmatpush.msra.mxu0 0.0
    %115 = vmatpush.msra.mxu0 0.0
    %116 = vmatpush.msra.mxu0 0.0
    %117 = vmatpush.msra.mxu0 0.0
    %118 = vmatpush.msra.mxu0 0.0
    %119 = vmatpush.msra.mxu0 %v38
    %120 = vmatpush.msra.mxu0 %v34
    %121 = vmatmul.f32.gmra.mxu0 %v54
    %v122 = vpop.f32.mrf.mxu0
    %v123 = vadd.f32 %v45, %v122
    %124 = vmatmul.f32.gmra.mxu0 %v57
    %v125 = vpop.f32.mrf.mxu0
    %v126 = vadd.f32 %v50, %v125
    %127 = vdwg.mxu0
    %128 = vmatpush.msra.mxu0 0.0
    %129 = vmatpush.msra.mxu0 0.0
    %130 = vmatpush.msra.mxu0 0.0
    %131 = vmatpush.msra.mxu0 0.0
    %132 = vmatpush.msra.mxu0 0.0
    %133 = vmatpush.msra.mxu0 0.0
    %134 = vmatpush.msra.mxu0 0.0
    %135 = vmatpush.msra.mxu0 0.0
    %136 = vmatpush.msra.mxu0 0.0
    %137 = vmatpush.msra.mxu0 0.0
    %138 = vmatpush.msra.mxu0 0.0
    %139 = vmatpush.msra.mxu0 0.0
    %140 = vmatpush.msra.mxu0 0.0
    %141 = vmatpush.msra.mxu0 0.0
    %142 = vmatpush.msra.mxu0 %v39
    %143 = vmatpush.msra.mxu0 %v35
    %144 = vmatmul.f32.gmra.mxu0 %v54
    %v145 = vpop.f32.mrf.mxu0
    %v146 = vadd.f32 %v45, %v145
    %147 = vmatmul.f32.gmra.mxu0 %v57
    %v148 = vpop.f32.mrf.mxu0
    %v149 = vadd.f32 %v50, %v148
    %150 = vdwg.mxu0
    %v151 = vld [vmem:[%s2] sm:$0xff]
    %v152 = vld [vmem:[%s2 + $0x8] sm:$0xff]
    %v153 = vld [vmem:[%s2 + $0x10] sm:$0xff]
    %v154 = vld [vmem:[%s2 + $0x18] sm:$0xff]
    %v155 = vld [vmem:[%s2 + $0x20] sm:$0x7f]
    %v156 = vld [vmem:[%s2 + $0x28] sm:$0x7f]
    %v157 = vld [vmem:[%s2 + $0x30] sm:$0x7f]
    %v158 = vld [vmem:[%s2 + $0x38] sm:$0x7f]
    %v159 = vadd.f32 %v77, %v151
    %v160 = vadd.f32 %v100, %v152
    %v161 = vadd.f32 %v123, %v153
    %v162 = vadd.f32 %v146, %v154
    %v163 = vadd.f32 %v80, %v155
    %v164 = vadd.f32 %v103, %v156
    %v165 = vadd.f32 %v126, %v157
    %v166 = vadd.f32 %v149, %v158
    %v167 = vld [vmem:[%s3] sm:$0xf]
    %v169 = vperm.slane %v167, 0
    %v170 = vperm.slane %v167, 1
    %v171 = vperm.slane %v167, 2
    %v172 = vperm.slane %v167, 3
    %v177 = vadd.f32 %v159, %v169
    %v178 = vadd.f32 %v160, %v170
    %v179 = vadd.f32 %v161, %v171
    %v180 = vadd.f32 %v162, %v172
    %v181 = vadd.f32 %v163, %v169
    %v182 = vadd.f32 %v164, %v170
    %v183 = vadd.f32 %v165, %v171
    %v184 = vadd.f32 %v166, %v172
    %185 = vst [vmem:[%s5] sm:$0xff] %v177
    %186 = vst [vmem:[%s5 + $0x8] sm:$0xff] %v178
    %187 = vst [vmem:[%s5 + $0x10] sm:$0xff] %v179
    %188 = vst.msk [vmem:[%s5 + $0x18] sm:$0xff] %vm52, %v180
    %189 = vst [vmem:[%s5 + $0x20] sm:$0x7f] %v181
    %190 = vst [vmem:[%s5 + $0x28] sm:$0x7f] %v182
    %191 = vst [vmem:[%s5 + $0x30] sm:$0x7f] %v183
    %vm192 = vcmask 129024
    %193 = vst.msk [vmem:[%s5 + $0x38] sm:$0x7f] %vm192, %v184
    // Predicated region
    $region22: #{model_forward.2} parent=1 // pred_check
      _
    $region23: #{model_forward.2} parent=1 // pred_check_branch
      %195 = sbr.rel (0) target = $region25
    $region24: #{model_forward.2} parent=1 // pred_region
      _
    $region25: #{model_forward.2} parent=1 // pred_fallthru
      _
    // Predicated region
    $region26: #{model_forward.2} parent=1 // pred_check
      _
    $region27: #{model_forward.2} parent=1 // pred_check_branch
      %197 = sbr.rel (0) target = $region29
    $region28: #{model_forward.2} parent=1 // pred_region
      _
    $region29: #{model_forward.2} parent=1 // pred_fallthru
      _

</llo_original>
